<compile_context>
chip_gen: v7x
topology: tpu7x:2x2x1
jax: 0.10.0
libtpu: 0.0.40
codegen_flags: <defaults>
</compile_context>

<pallas_src>
import jax
import jax.numpy as jnp
from jax.experimental import pallas as pl
from jax.experimental.pallas import tpu as pltpu


def _round_up(n, m):
    return ((n + m - 1) // m) * m


def _mlp_kernel(x_ref, w1_ref, b1_ref, w2_ref, b2_ref, w3_ref, b3_ref,
                w4_ref, b4_ref, o_ref):
    # fc1..fc3 on the MXU: bf16 operands (cast in-kernel), f32 accumulation.
    x_bf = x_ref[...].astype(jnp.bfloat16)
    h = jnp.dot(x_bf, w1_ref[...], preferred_element_type=jnp.float32)
    h = jnp.maximum(h + b1_ref[...], 0.0)

    h = jnp.dot(h.astype(jnp.bfloat16), w2_ref[...],
                preferred_element_type=jnp.float32)
    h = jnp.maximum(h + b2_ref[...], 0.0)

    h = jnp.dot(h.astype(jnp.bfloat16), w3_ref[...],
                preferred_element_type=jnp.float32)
    h = jnp.maximum(h + b3_ref[...], 0.0)

    # fc4: (tb, 32) @ (32, 1) as a VPU multiply + lane reduce.  keepdims gives a
    # sublane-major (tb, 1) column matching the (tb, 1) output block -> no relayout.
    z = jnp.sum(h * w4_ref[...], axis=-1, keepdims=True) + b4_ref[0, 0]

    # sigmoid: exp + reciprocal on the EUP.
    o_ref[...] = jax.nn.sigmoid(z)


def binary_classifier_forward(x, params, *, max_block_batch=8192):
    """x: (B, D_in) float32; params: name -> (W of shape (in, out), b of shape (1, out))."""
    B, d_in = x.shape
    w1, b1 = params["fc1"]
    w2, b2 = params["fc2"]
    w3, b3 = params["fc3"]
    w4, b4 = params["fc4"]
    d1, d2, d3 = w1.shape[1], w2.shape[1], w3.shape[1]

    # ---- batch tile selection ----------------------------------------------------
    # Big tiles amortize the ~0.35 us/step overhead; keep sublane (8) alignment.
    tb = min(max_block_batch, _round_up(B, 8))
    # v7x has 2 TensorCores: when B is large enough, keep >= 4 (even) grid steps so
    # the "parallel" batch axis can actually be sharded across both cores.
    if B >= 512:
        tb = min(tb, _round_up(pl.cdiv(B, 4), 128))
    grid = (pl.cdiv(B, tb),)

    # ---- parameter packing (tiny; weights stay VMEM-resident) ---------------------
    w1_bf = w1.astype(jnp.bfloat16)
    w2_bf = w2.astype(jnp.bfloat16)
    w3_bf = w3.astype(jnp.bfloat16)
    b1f = b1.astype(jnp.float32)
    b2f = b2.astype(jnp.float32)
    b3f = b3.astype(jnp.float32)
    w4_row = w4.reshape(1, -1).astype(jnp.float32)   # (1, 32), VPU path stays f32
    b4_sc = b4.reshape(1, 1).astype(jnp.float32)     # scalar, lives in SMEM

    # ---- VMEM budget / cost estimate ----------------------------------------------
    weight_bytes = ((w1_bf.size + w2_bf.size + w3_bf.size) * 2
                    + (b1f.size + b2f.size + b3f.size + w4_row.size + b4_sc.size) * 4)
    per_step_bytes = (2 * tb * d_in * 4                 # double-buffered f32 x tiles
                      + tb * (d1 + d2 + d3) * 4         # f32 intermediates
                      + 2 * tb * 4)                     # double-buffered output column
    vmem_limit = int(min(48 << 20,
                         max(32 << 20, 2 * (per_step_bytes + weight_bytes))))

    flops = 2 * B * (d_in * d1 + d1 * d2 + d2 * d3 + d3)
    bytes_accessed = x.size * 4 + B * 4 + weight_bytes
    cost = pl.CostEstimate(flops=flops, transcendentals=B,
                           bytes_accessed=bytes_accessed)

    def resident(shape):  # same block every grid step -> stays VMEM-resident
        return pl.BlockSpec(shape, lambda i: (0, 0))

    out = pl.pallas_call(
        _mlp_kernel,
        out_shape=jax.ShapeDtypeStruct((B, 1), jnp.float32),
        grid=grid,
        in_specs=[
            pl.BlockSpec((tb, d_in), lambda i: (i, 0)),          # streamed f32 x tiles
            resident(w1_bf.shape), resident(b1f.shape),
            resident(w2_bf.shape), resident(b2f.shape),
            resident(w3_bf.shape), resident(b3f.shape),
            resident(w4_row.shape),
            pl.BlockSpec(memory_space=pltpu.MemorySpace.SMEM),   # b4 scalar
        ],
        out_specs=pl.BlockSpec((tb, 1), lambda i: (i, 0)),       # column output, no relayout
        compiler_params=pltpu.CompilerParams(
            dimension_semantics=("parallel",),   # shard batch tiles across cores (v7x 2 TC)
            vmem_limit_bytes=vmem_limit),
        cost_estimate=cost,
    )(x, w1_bf, b1f, w2_bf, b2f, w3_bf, b3f, w4_row, b4_sc)

    return out


def init_params(key, input_dim):
    """Deterministic init matching the nn.Linear shapes of BinaryClassifier."""
    dims = [(input_dim, 128), (128, 64), (64, 32), (32, 1)]
    names = ["fc1", "fc2", "fc3", "fc4"]
    params = {}
    for name, (din, dout) in zip(names, dims):
        key, kw, kb = jax.random.split(key, 3)
        bound = 1.0 / (din ** 0.5)  # same scale as torch's default uniform init
        W = jax.random.uniform(kw, (din, dout), jnp.float32, -bound, bound)
        b = jax.random.uniform(kb, (1, dout), jnp.float32, -bound, bound)
        params[name] = (W, b)
    return params


def _reference(x, params):
    """Pure-JAX reference with the same dtype policy as the kernel (bf16 MXU, f32 accum)."""
    w1, b1 = params["fc1"]
    w2, b2 = params["fc2"]
    w3, b3 = params["fc3"]
    w4, b4 = params["fc4"]
    h = jnp.dot(x.astype(jnp.bfloat16), w1.astype(jnp.bfloat16),
                preferred_element_type=jnp.float32)
    h = jnp.maximum(h + b1, 0.0)
    h = jnp.dot(h.astype(jnp.bfloat16), w2.astype(jnp.bfloat16),
                preferred_element_type=jnp.float32)
    h = jnp.maximum(h + b2, 0.0)
    h = jnp.dot(h.astype(jnp.bfloat16), w3.astype(jnp.bfloat16),
                preferred_element_type=jnp.float32)
    h = jnp.maximum(h + b3, 0.0)
    z = h @ w4 + b4
    return jax.nn.sigmoid(z)


if __name__ == "__main__":
    key = jax.random.PRNGKey(0)
    key, kx = jax.random.split(key)
    batch, input_dim = 8, 32
    x = jax.random.normal(kx, (batch, input_dim), dtype=jnp.float32)
    params = init_params(key, input_dim)

    out = binary_classifier_forward(x, params)
    out = jax.block_until_ready(out)

    ref = _reference(x, params)
    assert out.shape == (batch, 1)
    err = jnp.max(jnp.abs(out - ref))
    assert jnp.allclose(out, ref, atol=2e-3, rtol=2e-3), f"max abs err = {err}"
    print("KERNEL_OK")
</pallas_src>

<mosaic_0001>
module attributes {stable_mosaic.version = 11 : i64} {
  func.func @_mlp_kernel(%arg0: i32, %arg1: memref<8x32xf32, #tpu.memory_space<vmem>>, %arg2: memref<32x128xbf16, #tpu.memory_space<vmem>>, %arg3: memref<1x128xf32, #tpu.memory_space<vmem>>, %arg4: memref<128x64xbf16, #tpu.memory_space<vmem>>, %arg5: memref<1x64xf32, #tpu.memory_space<vmem>>, %arg6: memref<64x32xbf16, #tpu.memory_space<vmem>>, %arg7: memref<1x32xf32, #tpu.memory_space<vmem>>, %arg8: memref<1x32xf32, #tpu.memory_space<vmem>>, %arg9: memref<1x1xf32, #tpu.memory_space<smem>>, %arg10: memref<8x1xf32, #tpu.memory_space<vmem>>) attributes {dimension_semantics = [#tpu.dimension_semantics<parallel>], iteration_bounds = array<i64: 1>, scalar_prefetch = 0 : i64, scratch_operands = 0 : i64, tpu.core_type = #tpu.core_type<tc>, window_params = [{transform_indices = @transform_0, window_bounds = array<i64: 8, 32>}, {pipeline_mode = #tpu.pipeline_mode<synchronous>, transform_indices = @transform_1, window_bounds = array<i64: 32, 128>}, {pipeline_mode = #tpu.pipeline_mode<synchronous>, transform_indices = @transform_2, window_bounds = array<i64: 1, 128>}, {pipeline_mode = #tpu.pipeline_mode<synchronous>, transform_indices = @transform_3, window_bounds = array<i64: 128, 64>}, {pipeline_mode = #tpu.pipeline_mode<synchronous>, transform_indices = @transform_4, window_bounds = array<i64: 1, 64>}, {pipeline_mode = #tpu.pipeline_mode<synchronous>, transform_indices = @transform_5, window_bounds = array<i64: 64, 32>}, {pipeline_mode = #tpu.pipeline_mode<synchronous>, transform_indices = @transform_6, window_bounds = array<i64: 1, 32>}, {pipeline_mode = #tpu.pipeline_mode<synchronous>, transform_indices = @transform_7, window_bounds = array<i64: 1, 32>}, {transform_indices = @transform_8, window_bounds = array<i64: 1, 1>}, {transform_indices = @transform_9, window_bounds = array<i64: 8, 1>}]} {
    %c0 = arith.constant 0 : index
    %c0_0 = arith.constant 0 : index
    %0 = vector.load %arg1[%c0, %c0_0] : memref<8x32xf32, #tpu.memory_space<vmem>>, vector<8x32xf32>
    %1 = arith.truncf %0 : vector<8x32xf32> to vector<8x32xbf16>
    %c0_1 = arith.constant 0 : index
    %c0_2 = arith.constant 0 : index
    %2 = vector.load %arg2[%c0_1, %c0_2] : memref<32x128xbf16, #tpu.memory_space<vmem>>, vector<32x128xbf16>
    %cst = arith.constant dense<0.000000e+00> : vector<8x128xf32>
    %3 = tpu.matmul %1, %2, %cst {dimension_numbers = #tpu.dot_dimension_numbers<[1], [0], [0], [1], [0, 0, 1, 1], [], []>} : vector<8x32xbf16>, vector<32x128xbf16>, vector<8x128xf32> -> vector<8x128xf32>
    %c0_3 = arith.constant 0 : index
    %c0_4 = arith.constant 0 : index
    %4 = vector.load %arg3[%c0_3, %c0_4] : memref<1x128xf32, #tpu.memory_space<vmem>>, vector<1x128xf32>
    %5 = vector.broadcast %4 : vector<1x128xf32> to vector<8x128xf32>
    %6 = arith.addf %3, %5 : vector<8x128xf32>
    %cst_5 = arith.constant 0.000000e+00 : f32
    %7 = vector.broadcast %cst_5 : f32 to vector<8x128xf32>
    %8 = arith.maximumf %6, %7 : vector<8x128xf32>
    %9 = arith.truncf %8 : vector<8x128xf32> to vector<8x128xbf16>
    %c0_6 = arith.constant 0 : index
    %c0_7 = arith.constant 0 : index
    %10 = vector.load %arg4[%c0_6, %c0_7] : memref<128x64xbf16, #tpu.memory_space<vmem>>, vector<128x64xbf16>
    %cst_8 = arith.constant dense<0.000000e+00> : vector<8x64xf32>
    %11 = tpu.matmul %9, %10, %cst_8 {dimension_numbers = #tpu.dot_dimension_numbers<[1], [0], [0], [1], [0, 0, 1, 1], [], []>} : vector<8x128xbf16>, vector<128x64xbf16>, vector<8x64xf32> -> vector<8x64xf32>
    %c0_9 = arith.constant 0 : index
    %c0_10 = arith.constant 0 : index
    %12 = vector.load %arg5[%c0_9, %c0_10] : memref<1x64xf32, #tpu.memory_space<vmem>>, vector<1x64xf32>
    %13 = vector.broadcast %12 : vector<1x64xf32> to vector<8x64xf32>
    %14 = arith.addf %11, %13 : vector<8x64xf32>
    %cst_11 = arith.constant 0.000000e+00 : f32
    %15 = vector.broadcast %cst_11 : f32 to vector<8x64xf32>
    %16 = arith.maximumf %14, %15 : vector<8x64xf32>
    %17 = arith.truncf %16 : vector<8x64xf32> to vector<8x64xbf16>
    %c0_12 = arith.constant 0 : index
    %c0_13 = arith.constant 0 : index
    %18 = vector.load %arg6[%c0_12, %c0_13] : memref<64x32xbf16, #tpu.memory_space<vmem>>, vector<64x32xbf16>
    %cst_14 = arith.constant dense<0.000000e+00> : vector<8x32xf32>
    %19 = tpu.matmul %17, %18, %cst_14 {dimension_numbers = #tpu.dot_dimension_numbers<[1], [0], [0], [1], [0, 0, 1, 1], [], []>} : vector<8x64xbf16>, vector<64x32xbf16>, vector<8x32xf32> -> vector<8x32xf32>
    %c0_15 = arith.constant 0 : index
    %c0_16 = arith.constant 0 : index
    %20 = vector.load %arg7[%c0_15, %c0_16] : memref<1x32xf32, #tpu.memory_space<vmem>>, vector<1x32xf32>
    %21 = vector.broadcast %20 : vector<1x32xf32> to vector<8x32xf32>
    %22 = arith.addf %19, %21 : vector<8x32xf32>
    %cst_17 = arith.constant 0.000000e+00 : f32
    %23 = vector.broadcast %cst_17 : f32 to vector<8x32xf32>
    %24 = arith.maximumf %22, %23 : vector<8x32xf32>
    %c0_18 = arith.constant 0 : index
    %c0_19 = arith.constant 0 : index
    %25 = vector.load %arg8[%c0_18, %c0_19] : memref<1x32xf32, #tpu.memory_space<vmem>>, vector<1x32xf32>
    %26 = vector.broadcast %25 : vector<1x32xf32> to vector<8x32xf32>
    %27 = arith.mulf %24, %26 : vector<8x32xf32>
    %cst_20 = arith.constant dense<0.000000e+00> : vector<8xf32>
    %28 = vector.multi_reduction <add>, %27, %cst_20 [1] : vector<8x32xf32> to vector<8xf32>
    %29 = vector.shape_cast %28 : vector<8xf32> to vector<8x1xf32>
    %c0_21 = arith.constant 0 : index
    %c0_22 = arith.constant 0 : index
    %30 = memref.load %arg9[%c0_21, %c0_22] : memref<1x1xf32, #tpu.memory_space<smem>>
    %31 = vector.broadcast %30 : f32 to vector<8x1xf32>
    %32 = arith.addf %29, %31 : vector<8x1xf32>
    %33 = arith.negf %32 : vector<8x1xf32>
    %34 = math.exp %33 : vector<8x1xf32>
    %cst_23 = arith.constant 1.000000e+00 : f32
    %35 = vector.broadcast %cst_23 : f32 to vector<8x1xf32>
    %36 = arith.addf %35, %34 : vector<8x1xf32>
    %37 = arith.divf %35, %36 : vector<8x1xf32>
    %c0_24 = arith.constant 0 : index
    %c0_25 = arith.constant 0 : index
    %38 = vector.load %arg10[%c0_24, %c0_25] : memref<8x1xf32, #tpu.memory_space<vmem>>, vector<8x1xf32>
    tpu.vector_store %arg10[%c0_24, %c0_25], %37 {strides = array<i32>} : memref<8x1xf32, #tpu.memory_space<vmem>>, vector<8x1xf32>,
    return
  }
  func.func @transform_0(%arg0: i32) -> (i32, i32) {
    %c0_i32 = arith.constant 0 : i32
    %c0_i32_0 = arith.constant 0 : i32
    return %arg0, %c0_i32 : i32, i32
  }
  func.func @transform_1(%arg0: i32) -> (i32, i32) {
    %c0_i32 = arith.constant 0 : i32
    %c0_i32_0 = arith.constant 0 : i32
    %c0_i32_1 = arith.constant 0 : i32
    return %c0_i32, %c0_i32_0 : i32, i32
  }
  func.func @transform_2(%arg0: i32) -> (i32, i32) {
    %c0_i32 = arith.constant 0 : i32
    %c0_i32_0 = arith.constant 0 : i32
    %c0_i32_1 = arith.constant 0 : i32
    return %c0_i32, %c0_i32_0 : i32, i32
  }
  func.func @transform_3(%arg0: i32) -> (i32, i32) {
    %c0_i32 = arith.constant 0 : i32
    %c0_i32_0 = arith.constant 0 : i32
    %c0_i32_1 = arith.constant 0 : i32
    return %c0_i32, %c0_i32_0 : i32, i32
  }
  func.func @transform_4(%arg0: i32) -> (i32, i32) {
    %c0_i32 = arith.constant 0 : i32
    %c0_i32_0 = arith.constant 0 : i32
    %c0_i32_1 = arith.constant 0 : i32
    return %c0_i32, %c0_i32_0 : i32, i32
  }
  func.func @transform_5(%arg0: i32) -> (i32, i32) {
    %c0_i32 = arith.constant 0 : i32
    %c0_i32_0 = arith.constant 0 : i32
    %c0_i32_1 = arith.constant 0 : i32
    return %c0_i32, %c0_i32_0 : i32, i32
  }
  func.func @transform_6(%arg0: i32) -> (i32, i32) {
    %c0_i32 = arith.constant 0 : i32
    %c0_i32_0 = arith.constant 0 : i32
    %c0_i32_1 = arith.constant 0 : i32
    return %c0_i32, %c0_i32_0 : i32, i32
  }
  func.func @transform_7(%arg0: i32) -> (i32, i32) {
    %c0_i32 = arith.constant 0 : i32
    %c0_i32_0 = arith.constant 0 : i32
    %c0_i32_1 = arith.constant 0 : i32
    return %c0_i32, %c0_i32_0 : i32, i32
  }
  func.func @transform_8(%arg0: i32) -> (i32, i32) {
    %c0_i32 = arith.constant 0 : i32
    %c0_i32_0 = arith.constant 0 : i32
    %c0_i32_1 = arith.constant 0 : i32
    return %c0_i32, %c0_i32_0 : i32, i32
  }
  func.func @transform_9(%arg0: i32) -> (i32, i32) {
    %c0_i32 = arith.constant 0 : i32
    %c0_i32_0 = arith.constant 0 : i32
    return %arg0, %c0_i32 : i32, i32
  }
}

</mosaic_0001>

<llo_original>
// kernel: tpu_custom_call.1
$region0: #{tpu_custom_call.1}
  #allocation0 [shape = 'u32[]', space=smem, size = 0x4, offset = 0x4, fixed_abs, tag = 'smem constant byte address 0x4 - core index']
  #allocation1 [shape = 'u32[144,128]{1,0:T(1,128)}', space=vmem, size = 0x12000, scoped, tag = 'internal scratch']
  #allocation2 [shape = 'f32[1,1]{1,0:T(1,128)S(6)}', space=smem, size = 0x200, scoped, tag = 'scoped memory for tpu_custom_call.1']
  %s0 = inlined_call_operand.vmem [shape: f32[8,32], index: 0, kind: input, shape index: {}]
  %s1 = inlined_call_operand.vmem [shape: bf16[32,128], index: 1, kind: input, shape index: {}]
  %s2 = inlined_call_operand.vmem [shape: f32[1,128], index: 2, kind: input, shape index: {}]
  %s3 = inlined_call_operand.vmem [shape: bf16[128,64], index: 3, kind: input, shape index: {}]
  %s4 = inlined_call_operand.vmem [shape: f32[1,64], index: 4, kind: input, shape index: {}]
  %s5 = inlined_call_operand.vmem [shape: bf16[64,32], index: 5, kind: input, shape index: {}]
  %s6 = inlined_call_operand.vmem [shape: f32[1,32], index: 6, kind: input, shape index: {}]
  %s7 = inlined_call_operand.vmem [shape: f32[1,32], index: 7, kind: input, shape index: {}]
  %s8 = inlined_call_operand.<no memory space> [shape: f32[1,1], index: 8, kind: input, shape index: {}]
  %s9 = inlined_call_operand.vmem [shape: f32[8,1], index: 9, kind: output, shape index: {}]
  %s10 = sld [smem:[#allocation0]]
  $region46: #{tpu_custom_call.1} parent=0
    _
  %s12 = ssub.s32 1, %s10
  %s13 = scalar_select 0, %s12, %s10
  %14 = sst [smem:[#allocation2]] %s8
  // Predicated region
  $region2: #{tpu_custom_call.1} parent=0 // pred_check
    _
  $region3: #{tpu_custom_call.1} parent=0 // pred_check_branch
    %16 = sbr.rel (0) target = $region5
  $region4: #{tpu_custom_call.1} parent=0 // pred_region
    _
  $region5: #{tpu_custom_call.1} parent=0 // pred_fallthru
    _
  // Predicated region
  $region6: #{tpu_custom_call.1} parent=0 // pred_check
    _
  $region7: #{tpu_custom_call.1} parent=0 // pred_check_branch
    %18 = sbr.rel (0) target = $region9
  $region8: #{tpu_custom_call.1} parent=0 // pred_region
    _
  $region9: #{tpu_custom_call.1} parent=0 // pred_fallthru
    _
  // Predicated region
  $region10: #{tpu_custom_call.1} parent=0 // pred_check
    _
  $region11: #{tpu_custom_call.1} parent=0 // pred_check_branch
    %20 = sbr.rel (0) target = $region13
  $region12: #{tpu_custom_call.1} parent=0 // pred_region
    _
  $region13: #{tpu_custom_call.1} parent=0 // pred_fallthru
    _
  // Predicated region
  $region14: #{tpu_custom_call.1} parent=0 // pred_check
    _
  $region15: #{tpu_custom_call.1} parent=0 // pred_check_branch
    %22 = sbr.rel (0) target = $region17
  $region16: #{tpu_custom_call.1} parent=0 // pred_region
    _
  $region17: #{tpu_custom_call.1} parent=0 // pred_fallthru
    _
  // Predicated region
  $region18: #{tpu_custom_call.1} parent=0 // pred_check
    _
  $region19: #{tpu_custom_call.1} parent=0 // pred_check_branch
    %24 = sbr.rel (0) target = $region21
  $region20: #{tpu_custom_call.1} parent=0 // pred_region
    _
  $region21: #{tpu_custom_call.1} parent=0 // pred_fallthru
    _
  // Predicated region
  $region22: #{tpu_custom_call.1} parent=0 // pred_check
    _
  $region23: #{tpu_custom_call.1} parent=0 // pred_check_branch
    %26 = sbr.rel (0) target = $region25
  $region24: #{tpu_custom_call.1} parent=0 // pred_region
    _
  $region25: #{tpu_custom_call.1} parent=0 // pred_fallthru
    _
  // Predicated region
  $region26: #{tpu_custom_call.1} parent=0 // pred_check
    _
  $region27: #{tpu_custom_call.1} parent=0 // pred_check_branch
    %28 = sbr.rel (0) target = $region29
  $region28: #{tpu_custom_call.1} parent=0 // pred_region
    _
  $region29: #{tpu_custom_call.1} parent=0 // pred_fallthru
    _
  // Predicated region
  $region30: #{tpu_custom_call.1} parent=0 // pred_check
    _
  $region31: #{tpu_custom_call.1} parent=0 // pred_check_branch
    %30 = sbr.rel (0) target = $region33
  $region32: #{tpu_custom_call.1} parent=0 // pred_region
    _
  $region33: #{tpu_custom_call.1} parent=0 // pred_fallthru
    _
  // Predicated region
  $region34: #{tpu_custom_call.1} parent=0 // pred_check
    _
  $region35: #{tpu_custom_call.1} parent=0 // pred_check_branch
    %32 = sbr.rel (0) target = $region37
  $region36: #{tpu_custom_call.1} parent=0 // pred_region
    _
  $region37: #{tpu_custom_call.1} parent=0 // pred_fallthru
    _
  %v34 = vld [vmem:[%s0] sm:$0xff]
  %v35 = vpack.c.bf16 %v34, %v34
  %v36 = vld [vmem:[%s1] sm:$0xf]
  %v37 = vld [vmem:[%s1 + $0x4] sm:$0xf]
  %v38 = vld [vmem:[%s1 + $0x8] sm:$0xf]
  %v39 = vld [vmem:[%s1 + $0xc] sm:$0xf]
  %v40 = vld [vmem:[%s2] sm:$0x1]
  %v42 = vlaneseq
  %v43 = vshrl.u32 %v42, 7
  %v44 = vsub.s32 0, %v43
  %v45 = vrot.slane %v40, %v44
  %v51 = vunpack.c.l.b16 %v36
  %v52 = vunpack.c.l.b16 %v37
  %v53 = vunpack.c.l.b16 %v38
  %v54 = vunpack.c.l.b16 %v39
  %v55 = vpack.c.b16 %v52, %v51
  %v56 = vpack.c.b16 %v54, %v53
  %vm59 = vcmask 261120
  %v61 = vsel %vm59, %v35, 0
  %63 = vmatprep.subr.bf16.mxu0 0
  %64 = vmatpush1.bf16.msra.mxu0 %v55
  %65 = vmatprep.subr.bf16.mxu0 0
  %66 = vmatpush1.bf16.msra.mxu0 %v56
  %67 = vmatprep.subr.bf16.mxu0 0
  %68 = vmatpush1.bf16.msra.mxu0 0
  %69 = vmatprep.subr.bf16.mxu0 0
  %70 = vmatpush1.bf16.msra.mxu0 0
  %71 = vmatprep.subr.bf16.mxu0 0
  %72 = vmatpush1.bf16.msra.mxu0 0
  %73 = vmatprep.subr.bf16.mxu0 0
  %74 = vmatpush1.bf16.msra.mxu0 0
  %75 = vmatprep.subr.bf16.mxu0 0
  %76 = vmatpush1.bf16.msra.mxu0 0
  %77 = vmatprep.subr.bf16.mxu0 0
  %78 = vmatpush1.bf16.msra.mxu0 0
  %79 = vmatprep.subr.bf16.mxu0 0
  %80 = vmatpush1.bf16.msra.mxu0 0
  %81 = vmatprep.subr.bf16.mxu0 0
  %82 = vmatpush1.bf16.msra.mxu0 0
  %83 = vmatprep.subr.bf16.mxu0 0
  %84 = vmatpush1.bf16.msra.mxu0 0
  %85 = vmatprep.subr.bf16.mxu0 0
  %86 = vmatpush1.bf16.msra.mxu0 0
  %87 = vmatprep.subr.bf16.mxu0 0
  %88 = vmatpush1.bf16.msra.mxu0 0
  %89 = vmatprep.subr.bf16.mxu0 0
  %90 = vmatpush1.bf16.msra.mxu0 0
  %91 = vmatprep.subr.bf16.mxu0 0
  %92 = vmatpush1.bf16.msra.mxu0 0
  %93 = vmatprep.subr.bf16.mxu0 0
  %94 = vmatpush1.bf16.msra.mxu0 0
  %95 = vmatprep.mubr.bf16.mxu0 0
  %96 = vmatmul.mubr.bf16.gmra.mrb[0].mxu0 %v61
  %v97 = vpop.f32.mrb[0].mxu0
  %v98 = vadd.f32 %v45, %v97
  %v99 = vpop.f32.mrb[0].mxu0
  %v100 = vpop.f32.mrb[0].mxu0
  %v101 = vpop.f32.mrb[0].mxu0
  %102 = vdwg.mxu0
  %v103 = vmax.f32 %v98, 0.0
  %v104 = vpack.c.bf16 %v103, %v103
  %v105 = vld [vmem:[%s3] sm:$0xf]
  %v106 = vld [vmem:[%s3 + $0x4] sm:$0xf]
  %v107 = vld [vmem:[%s3 + $0x8] sm:$0xf]
  %v108 = vld [vmem:[%s3 + $0xc] sm:$0xf]
  %v109 = vld [vmem:[%s3 + $0x10] sm:$0xf]
  %v110 = vld [vmem:[%s3 + $0x14] sm:$0xf]
  %v111 = vld [vmem:[%s3 + $0x18] sm:$0xf]
  %v112 = vld [vmem:[%s3 + $0x1c] sm:$0xf]
  %v113 = vld [vmem:[%s3 + $0x20] sm:$0xf]
  %v114 = vld [vmem:[%s3 + $0x24] sm:$0xf]
  %v115 = vld [vmem:[%s3 + $0x28] sm:$0xf]
  %v116 = vld [vmem:[%s3 + $0x2c] sm:$0xf]
  %v117 = vld [vmem:[%s3 + $0x30] sm:$0xf]
  %v118 = vld [vmem:[%s3 + $0x34] sm:$0xf]
  %v119 = vld [vmem:[%s3 + $0x38] sm:$0xf]
  %v120 = vld [vmem:[%s3 + $0x3c] sm:$0xf]
  %v121 = vld [vmem:[%s4] sm:$0x1]
  %v123 = vlaneseq
  %v124 = vshrl.u32 %v123, 7
  %v125 = vsub.s32 0, %v124
  %v126 = vrot.slane %v121, %v125
  %v144 = vunpack.c.l.b16 %v105
  %v145 = vunpack.c.l.b16 %v106
  %v146 = vunpack.c.l.b16 %v107
  %v147 = vunpack.c.l.b16 %v108
  %v148 = vunpack.c.l.b16 %v109
  %v149 = vunpack.c.l.b16 %v110
  %v150 = vunpack.c.l.b16 %v111
  %v151 = vunpack.c.l.b16 %v112
  %v152 = vunpack.c.l.b16 %v113
  %v153 = vunpack.c.l.b16 %v114
  %v154 = vunpack.c.l.b16 %v115
  %v155 = vunpack.c.l.b16 %v116
  %v156 = vunpack.c.l.b16 %v117
  %v157 = vunpack.c.l.b16 %v118
  %v158 = vunpack.c.l.b16 %v119
  %v159 = vunpack.c.l.b16 %v120
  %v160 = vpack.c.b16 %v145, %v144
  %v161 = vpack.c.b16 %v147, %v146
  %v162 = vpack.c.b16 %v149, %v148
  %v163 = vpack.c.b16 %v151, %v150
  %v164 = vpack.c.b16 %v153, %v152
  %v165 = vpack.c.b16 %v155, %v154
  %v166 = vpack.c.b16 %v157, %v156
  %v167 = vpack.c.b16 %v159, %v158
  %176 = vmatprep.subr.bf16.mxu0 0
  %177 = vmatpush1.bf16.msra.mxu0 %v160
  %178 = vmatprep.subr.bf16.mxu0 0
  %179 = vmatpush1.bf16.msra.mxu0 %v161
  %180 = vmatprep.subr.bf16.mxu0 0
  %181 = vmatpush1.bf16.msra.mxu0 %v162
  %182 = vmatprep.subr.bf16.mxu0 0
  %183 = vmatpush1.bf16.msra.mxu0 %v163
  %184 = vmatprep.subr.bf16.mxu0 0
  %185 = vmatpush1.bf16.msra.mxu0 %v164
  %186 = vmatprep.subr.bf16.mxu0 0
  %187 = vmatpush1.bf16.msra.mxu0 %v165
  %188 = vmatprep.subr.bf16.mxu0 0
  %189 = vmatpush1.bf16.msra.mxu0 %v166
  %190 = vmatprep.subr.bf16.mxu0 0
  %191 = vmatpush1.bf16.msra.mxu0 %v167
  %192 = vmatprep.subr.bf16.mxu0 0
  %193 = vmatpush1.bf16.msra.mxu0 0
  %194 = vmatprep.subr.bf16.mxu0 0
  %195 = vmatpush1.bf16.msra.mxu0 0
  %196 = vmatprep.subr.bf16.mxu0 0
  %197 = vmatpush1.bf16.msra.mxu0 0
  %198 = vmatprep.subr.bf16.mxu0 0
  %199 = vmatpush1.bf16.msra.mxu0 0
  %200 = vmatprep.subr.bf16.mxu0 0
  %201 = vmatpush1.bf16.msra.mxu0 0
  %202 = vmatprep.subr.bf16.mxu0 0
  %203 = vmatpush1.bf16.msra.mxu0 0
  %204 = vmatprep.subr.bf16.mxu0 0
  %205 = vmatpush1.bf16.msra.mxu0 0
  %206 = vmatprep.subr.bf16.mxu0 0
  %207 = vmatpush1.bf16.msra.mxu0 0
  %208 = vmatprep.mubr.bf16.mxu0 0
  %209 = vmatmul.mubr.bf16.gmra.mrb[0].mxu0 %v104
  %v210 = vpop.f32.mrb[0].mxu0
  %v211 = vadd.f32 %v126, %v210
  %v212 = vpop.f32.mrb[0].mxu0
  %v213 = vpop.f32.mrb[0].mxu0
  %v214 = vpop.f32.mrb[0].mxu0
  %215 = vdwg.mxu0
  %v216 = vmax.f32 %v211, 0.0
  %v217 = vpack.c.bf16 %v216, %v216
  %v218 = vld [vmem:[%s5] sm:$0xf]
  %v219 = vld [vmem:[%s5 + $0x4] sm:$0xf]
  %v220 = vld [vmem:[%s5 + $0x8] sm:$0xf]
  %v221 = vld [vmem:[%s5 + $0xc] sm:$0xf]
  %v222 = vld [vmem:[%s5 + $0x10] sm:$0xf]
  %v223 = vld [vmem:[%s5 + $0x14] sm:$0xf]
  %v224 = vld [vmem:[%s5 + $0x18] sm:$0xf]
  %v225 = vld [vmem:[%s5 + $0x1c] sm:$0xf]
  %v226 = vld [vmem:[%s6] sm:$0x1]
  %v228 = vlaneseq
  %v229 = vshrl.u32 %v228, 7
  %v230 = vsub.s32 0, %v229
  %v231 = vrot.slane %v226, %v230
  %v241 = vunpack.c.l.b16 %v218
  %v242 = vunpack.c.l.b16 %v219
  %v243 = vunpack.c.l.b16 %v220
  %v244 = vunpack.c.l.b16 %v221
  %v245 = vunpack.c.l.b16 %v222
  %v246 = vunpack.c.l.b16 %v223
  %v247 = vunpack.c.l.b16 %v224
  %v248 = vunpack.c.l.b16 %v225
  %v249 = vpack.c.b16 %v242, %v241
  %v250 = vpack.c.b16 %v244, %v243
  %v251 = vpack.c.b16 %v246, %v245
  %v252 = vpack.c.b16 %v248, %v247
  %vm257 = vcmask 523264
  %v259 = vsel %vm257, %v217, 0
  %261 = vmatprep.subr.bf16.mxu0 0
  %262 = vmatpush1.bf16.msra.mxu0 %v249
  %263 = vmatprep.subr.bf16.mxu0 0
  %264 = vmatpush1.bf16.msra.mxu0 %v250
  %265 = vmatprep.subr.bf16.mxu0 0
  %266 = vmatpush1.bf16.msra.mxu0 %v251
  %267 = vmatprep.subr.bf16.mxu0 0
  %268 = vmatpush1.bf16.msra.mxu0 %v252
  %269 = vmatprep.subr.bf16.mxu0 0
  %270 = vmatpush1.bf16.msra.mxu0 0
  %271 = vmatprep.subr.bf16.mxu0 0
  %272 = vmatpush1.bf16.msra.mxu0 0
  %273 = vmatprep.subr.bf16.mxu0 0
  %274 = vmatpush1.bf16.msra.mxu0 0
  %275 = vmatprep.subr.bf16.mxu0 0
  %276 = vmatpush1.bf16.msra.mxu0 0
  %277 = vmatprep.subr.bf16.mxu0 0
  %278 = vmatpush1.bf16.msra.mxu0 0
  %279 = vmatprep.subr.bf16.mxu0 0
  %280 = vmatpush1.bf16.msra.mxu0 0
  %281 = vmatprep.subr.bf16.mxu0 0
  %282 = vmatpush1.bf16.msra.mxu0 0
  %283 = vmatprep.subr.bf16.mxu0 0
  %284 = vmatpush1.bf16.msra.mxu0 0
  %285 = vmatprep.subr.bf16.mxu0 0
  %286 = vmatpush1.bf16.msra.mxu0 0
  %287 = vmatprep.subr.bf16.mxu0 0
  %288 = vmatpush1.bf16.msra.mxu0 0
  %289 = vmatprep.subr.bf16.mxu0 0
  %290 = vmatpush1.bf16.msra.mxu0 0
  %291 = vmatprep.subr.bf16.mxu0 0
  %292 = vmatpush1.bf16.msra.mxu0 0
  %293 = vmatprep.mubr.bf16.mxu0 0
  %294 = vmatmul.mubr.bf16.gmra.mrb[0].mxu0 %v259
  %v295 = vpop.f32.mrb[0].mxu0
  %v296 = vadd.f32 %v231, %v295
  %v297 = vpop.f32.mrb[0].mxu0
  %v298 = vpop.f32.mrb[0].mxu0
  %v299 = vpop.f32.mrb[0].mxu0
  %300 = vdwg.mxu0
  %v301 = vmax.f32 %v296, 0.0
  %v302 = vld [vmem:[%s7] sm:$0x1]
  %v304 = vlaneseq
  %v305 = vshrl.u32 %v304, 7
  %v306 = vsub.s32 0, %v305
  %v307 = vrot.slane %v302, %v306
  %v309 = vmul.f32 %v301, %v307
  %v310 = vsel %vm59, %v309, 0.0
  %311 = vadd.xlane.f32.xlu0 %v310
  %v312 = vpop.xlane.xlu0 %311
  %s313 = sld [smem:[#allocation2]]
  %v314 = vstv %s313
  %v315 = vadd.f32 %v312, %v314
  %v316 = vxor.u32 %v315, 2147483648
  %v317 = vmul.f32 %v316, 1.442695
  %v318 = vpow.pop %v317
  %v319 = vadd.f32 %v318, 1.0
  %v320 = vrcp.pop %v319
  %v321 = vmul.f32 1.0, %v320
  %vm322 = vcmask 7168
  %323 = vst.msk [vmem:[%s9] sm:$0xff] %vm322, %v321
  // Predicated region
  $region38: #{tpu_custom_call.1} parent=0 // pred_check
    _
  $region39: #{tpu_custom_call.1} parent=0 // pred_check_branch
    %325 = sbr.rel (0) target = $region41
  $region40: #{tpu_custom_call.1} parent=0 // pred_region
    _
  $region41: #{tpu_custom_call.1} parent=0 // pred_fallthru
    _
  // Predicated region
  $region42: #{tpu_custom_call.1} parent=0 // pred_check
    _
  $region43: #{tpu_custom_call.1} parent=0 // pred_check_branch
    %327 = sbr.rel (0) target = $region45
  $region44: #{tpu_custom_call.1} parent=0 // pred_region
    _
  $region45: #{tpu_custom_call.1} parent=0 // pred_fallthru
    _

</llo_original>
